<compile_context>
chip_gen: v7x
topology: tpu7x:2x2x1
jax: 0.10.0
libtpu: 0.0.40
codegen_flags: <defaults>
</compile_context>

<pallas_src>
import functools

import jax
import jax.numpy as jnp
from jax.experimental import pallas as pl
from jax.experimental.pallas import tpu as pltpu


_MAX_TIME_BLOCK = 32      # kernel 2 statically unrolls its time block
_ROW_BLOCK_TARGET = 512   # kernel-1 row-block target (tile sweeps: ~85% of
                          # HBM roofline at 512-row tiles vs ~29% at 128)


# ----------------------------- kernels -------------------------------------


def _ln_proj_kernel(x_ref, gamma_ref, beta_ref, wih_ref, bias_ref, out_ref):
    """LayerNorm + input projection for one block of flattened (rows, F)."""
    x = x_ref[...].astype(jnp.float32)                        # (R, F)
    mean = jnp.mean(x, axis=-1, keepdims=True)
    xc = x - mean
    var = jnp.mean(xc * xc, axis=-1, keepdims=True)
    xn = xc * jax.lax.rsqrt(var + 1e-5)
    xn = xn * gamma_ref[...] + beta_ref[...]                   # (R, F) f32
    pre = jnp.dot(xn.astype(wih_ref.dtype), wih_ref[...],
                  preferred_element_type=jnp.float32)          # (R, Gp) f32
    out_ref[...] = (pre + bias_ref[...]).astype(out_ref.dtype)


def _make_recurrent_kernel(time_block, hidden_pad):
    """Time-blocked LSTM recurrence; only h @ W_hh^T is on the serial path."""
    TT = int(time_block)
    Hp = int(hidden_pad)
    Gp = 4 * Hp

    def kernel(pg_ref, whh_ref, out_ref, h_sc, c_sc):
        b = pl.program_id(0)

        # h/c live in *per-batch-block* VMEM scratch (indexed by the batch
        # grid index), so correctness does not rely on how batch blocks are
        # interleaved / sharded across TensorCores; each block re-zeros its
        # own slot at its first time block.
        @pl.when(pl.program_id(1) == 0)
        def _():
            h_sc[b] = jnp.zeros(h_sc.shape[1:], h_sc.dtype)
            c_sc[b] = jnp.zeros(c_sc.shape[1:], c_sc.dtype)

        whh = whh_ref[...]                  # (Hp, Gp) resident constant
        mm_dtype = whh.dtype
        h = h_sc[b]                         # (Bb, Hp) f32 carry
        c = c_sc[b]
        Bb = h.shape[0]

        def sigmoid(v):
            # One EUP transcendental (tanh) instead of exp + reciprocal.
            return 0.5 * jnp.tanh(0.5 * v) + 0.5

        # Bounded static unroll (TT <= _MAX_TIME_BLOCK); longer sequences are
        # handled by the sequential grid axis, not by a larger unroll.  All
        # slices are static; gate slices are 128-lane aligned (Hp % 128 == 0).
        for tt in range(TT):
            pg = pg_ref[:, tt:tt + 1, :].astype(jnp.float32).reshape(Bb, Gp)
            gates = pg + jnp.dot(h.astype(mm_dtype), whh,
                                 preferred_element_type=jnp.float32)
            i = sigmoid(gates[:, 0 * Hp:1 * Hp])
            f = sigmoid(gates[:, 1 * Hp:2 * Hp])
            g = jnp.tanh(gates[:, 2 * Hp:3 * Hp])
            o = sigmoid(gates[:, 3 * Hp:4 * Hp])
            c = f * c + i * g
            h = o * jnp.tanh(c)
            y = jnp.tanh(h)                 # module's trailing F.tanh
            out_ref[:, tt:tt + 1, :] = y[:, None, :].astype(out_ref.dtype)

        h_sc[b] = h
        c_sc[b] = c

    return kernel


# ----------------------------- helpers --------------------------------------


def _round_up(x, m):
    return ((x + m - 1) // m) * m


def _pick_row_block(n_rows, target=_ROW_BLOCK_TARGET):
    """Largest multiple-of-8 divisor of n_rows that is <= target."""
    if n_rows <= target:
        return n_rows
    for cand in range(target - target % 8, 7, -8):
        if n_rows % cand == 0:
            return cand
    return n_rows


@functools.lru_cache(maxsize=None)
def _single_buffer_supported():
    """Probe pl.Buffered(1) support once, so the real forward pass never needs
    a broad try/except that could hide genuine failures."""
    def _copy(x_ref, o_ref):
        o_ref[...] = x_ref[...] + 0.0

    try:
        probe = pl.pallas_call(
            _copy,
            out_shape=jax.ShapeDtypeStruct((8, 128), jnp.float32),
            grid_spec=pltpu.PrefetchScalarGridSpec(
                num_scalar_prefetch=0,
                grid=(2,),
                in_specs=[pl.BlockSpec((8, 128), lambda i: (0, 0),
                                       pipeline_mode=pl.Buffered(1))],
                out_specs=pl.BlockSpec((8, 128), lambda i: (0, 0)),
            ),
        )
        jax.block_until_ready(probe(jnp.zeros((8, 128), jnp.float32)))
        return True
    except Exception:           # probe only: decides a buffering policy
        return False


@functools.lru_cache(maxsize=None)
def _vmem_limit_bytes():
    """Scoped-VMEM budget derived from the chip (v7x: 64 MiB physical per TC,
    v5e/v6e: 128 MiB), with headroom for Mosaic-internal scratch."""
    try:
        cap = int(pltpu.get_tpu_info().vmem_capacity_bytes)
    except Exception:           # probe only; fall back to a conservative cap
        cap = 64 * 1024 * 1024
    return int(min(max(cap - 16 * 1024 * 1024, 32 * 1024 * 1024),
                   112 * 1024 * 1024))


def _pack_gate_rows(w, hp):
    """Re-stack PyTorch-ordered gate rows (i,f,g,o) of w:(4H, K) into
    (4*hp, K), zero-padding each gate's H rows up to hp."""
    h4, _ = w.shape
    h = h4 // 4
    out = jnp.zeros((4 * hp,) + w.shape[1:], w.dtype)
    for g in range(4):
        out = out.at[g * hp:g * hp + h].set(w[g * h:(g + 1) * h])
    return out


# ----------------------------- wrapper --------------------------------------


def _lstm_cell_forward_impl(x, params, *, time_block, num_batch_blocks,
                            matmul_dtype, single_buffer_consts):
    gamma, beta = params["gamma"], params["beta"]
    w_ih, w_hh = params["w_ih"], params["w_hh"]
    b_ih, b_hh = params["b_ih"], params["b_hh"]

    B, T, F = x.shape
    H = w_hh.shape[1]
    TT = int(time_block)
    NB = int(num_batch_blocks)
    assert NB >= 1
    assert TT % 8 == 0 and TT <= _MAX_TIME_BLOCK, (
        "time_block is statically unrolled; keep it a small multiple of 8")

    matmul_dtype = jnp.dtype(matmul_dtype)
    # Pregates: bf16 on the fast path (halves the HBM roundtrip of the largest
    # intermediate), f32 on the validation path.
    pg_dtype = jnp.float32 if matmul_dtype == jnp.float32 else jnp.bfloat16

    # Lane-align the hidden dim (gate slices free, output stores lane-dense).
    Hp = _round_up(H, 128)
    Gp = 4 * Hp

    Tp = _round_up(T, TT)
    Bb = -(-B // NB)                      # ceil(B / NB)
    Bp = NB * Bb

    # ---- pack parameters (tiny; done once per call outside the kernels) ----
    gamma2 = gamma.reshape(1, F).astype(jnp.float32)
    beta2 = beta.reshape(1, F).astype(jnp.float32)
    wih_t = _pack_gate_rows(w_ih.astype(jnp.float32), Hp).T.astype(matmul_dtype)
    whh_base = _pack_gate_rows(w_hh.astype(jnp.float32), Hp).T      # (H, Gp)
    whh_t = (jnp.zeros((Hp, Gp), jnp.float32).at[:H, :].set(whh_base)
             .astype(matmul_dtype))                                  # (Hp, Gp)
    bias = _pack_gate_rows((b_ih + b_hh).astype(jnp.float32)[:, None],
                           Hp).reshape(1, Gp)                        # (1, Gp)

    # ---- pad x (cheap: x is the smallest array); the flatten/reshape around
    # kernel 1 are contiguous, i.e. free -- no external transposes. ----
    x_f32 = x.astype(jnp.float32)
    if (Bp, Tp) != (B, T):
        # Trailing zero-padded timesteps / batch rows never influence the
        # first T outputs of a forward LSTM and are sliced away below.
        x_f32 = jnp.pad(x_f32, ((0, Bp - B), (0, Tp - T), (0, 0)))
    n_rows = Bp * Tp
    x_flat = x_f32.reshape(n_rows, F)

    R = _pick_row_block(n_rows)           # large, decoupled from (Bb, TT)
    vmem_limit = _vmem_limit_bytes()
    w_bytes = matmul_dtype.itemsize
    pg_bytes = jnp.dtype(pg_dtype).itemsize

    def const_spec(shape):
        # Constant operands: index_map never changes -> single buffering when
        # the runtime supports it (saves VMEM, no pipelining needed).
        if single_buffer_consts:
            return pl.BlockSpec(shape, lambda *idx: (0,) * len(shape),
                                pipeline_mode=pl.Buffered(1))
        return pl.BlockSpec(shape, lambda *idx: (0,) * len(shape))

    # ---- Kernel 1: parallel LayerNorm + input projection (big row blocks) --
    ln_cost = pl.CostEstimate(
        flops=int(2 * n_rows * F * Gp + 8 * n_rows * F),
        transcendentals=int(n_rows),
        bytes_accessed=int(4 * n_rows * F + pg_bytes * n_rows * Gp
                           + w_bytes * F * Gp),
    )
    pregates_flat = pl.pallas_call(
        _ln_proj_kernel,
        out_shape=jax.ShapeDtypeStruct((n_rows, Gp), pg_dtype),
        grid_spec=pltpu.PrefetchScalarGridSpec(
            num_scalar_prefetch=0,
            grid=(n_rows // R,),
            in_specs=[
                pl.BlockSpec((R, F), lambda r: (r, 0)),        # x rows
                const_spec((1, F)),                            # gamma
                const_spec((1, F)),                            # beta
                const_spec((F, Gp)),                           # W_ih^T (padded)
                const_spec((1, Gp)),                           # b_ih + b_hh
            ],
            out_specs=pl.BlockSpec((R, Gp), lambda r: (r, 0)),
        ),
        compiler_params=pltpu.CompilerParams(
            dimension_semantics=("parallel",),
            vmem_limit_bytes=vmem_limit,
        ),
        cost_estimate=ln_cost,
    )(x_flat, gamma2, beta2, wih_t, bias)

    pregates = pregates_flat.reshape(Bp, Tp, Gp)    # contiguous -> free

    # ---- Kernel 2: sequential, time-blocked recurrence ----------------------
    # VMEM sanity check: the pregates double-buffer is the dominant term
    # (matters most on v7x's 64 MiB VMEM).
    working_set = (2 * Bb * TT * Gp * pg_bytes         # pregates double-buffer
                   + 2 * Bb * TT * Hp * 4              # output double-buffer
                   + (1 if single_buffer_consts else 2) * Hp * Gp * w_bytes
                   + 2 * NB * Bb * Hp * 4)             # h/c scratch
    assert working_set <= vmem_limit, (
        f"recurrent working set {working_set} B exceeds VMEM budget "
        f"{vmem_limit} B; reduce time_block or increase num_batch_blocks")

    rec_cost = pl.CostEstimate(
        flops=int(2 * Bp * Tp * Hp * Gp + 16 * Bp * Tp * Hp),
        transcendentals=int(6 * Bp * Tp * Hp),
        bytes_accessed=int(pg_bytes * Bp * Tp * Gp + 4 * Bp * Tp * Hp
                           + w_bytes * Hp * Gp),
    )
    out_pad = pl.pallas_call(
        _make_recurrent_kernel(TT, Hp),
        out_shape=jax.ShapeDtypeStruct((Bp, Tp, Hp), jnp.float32),
        grid_spec=pltpu.PrefetchScalarGridSpec(
            num_scalar_prefetch=0,
            grid=(NB, Tp // TT),
            in_specs=[
                pl.BlockSpec((Bb, TT, Gp), lambda b, t: (b, t, 0)),  # pregates
                const_spec((Hp, Gp)),                                # W_hh^T
            ],
            out_specs=pl.BlockSpec((Bb, TT, Hp), lambda b, t: (b, t, 0)),
            scratch_shapes=[
                pltpu.VMEM((NB, Bb, Hp), jnp.float32),   # h carry per block
                pltpu.VMEM((NB, Bb, Hp), jnp.float32),   # c carry per block
            ],
        ),
        compiler_params=pltpu.CompilerParams(
            # Batch axis "parallel" -> shardable across v7x's 2 TensorCores
            # (each core runs whole batch blocks, time-major, with its own
            # scratch slot).  Time axis is the serial recurrence.
            dimension_semantics=("parallel", "arbitrary"),
            vmem_limit_bytes=vmem_limit,
        ),
        cost_estimate=rec_cost,
    )(pregates, whh_t)

    # Undo padding.  No transposes; this slice vanishes when B, T, H are
    # already aligned (e.g. H a multiple of 128 at production sizes).
    return out_pad[:B, :T, :H]


def lstm_cell_forward(x, params, *, time_block=8, num_batch_blocks=1,
                      matmul_dtype=jnp.bfloat16):
    """x: (B, T, F) -> (B, T, H), matching PyTorch LSTMCell.forward.

    num_batch_blocks: >=2 lets the recurrent kernel's parallel batch axis
    shard across v7x's two TensorCores (no-op on 1-TC chips)."""
    return _lstm_cell_forward_impl(
        x, params,
        time_block=time_block,
        num_batch_blocks=num_batch_blocks,
        matmul_dtype=matmul_dtype,
        single_buffer_consts=_single_buffer_supported())


# ------------------------- params & reference --------------------------------


def init_params(key, input_feature=8, hidden_feature=8):
    """Deterministic synthetic parameters matching nn.LayerNorm + nn.LSTM."""
    k1, k2, k3, k4 = jax.random.split(key, 4)
    H, F = hidden_feature, input_feature
    bound = 1.0 / jnp.sqrt(jnp.float32(H))
    return {
        "gamma": jnp.ones((F,), jnp.float32),
        "beta": jnp.zeros((F,), jnp.float32),
        "w_ih": jax.random.uniform(k1, (4 * H, F), jnp.float32, -bound, bound),
        "w_hh": jax.random.uniform(k2, (4 * H, H), jnp.float32, -bound, bound),
        "b_ih": jax.random.uniform(k3, (4 * H,), jnp.float32, -bound, bound),
        "b_hh": jax.random.uniform(k4, (4 * H,), jnp.float32, -bound, bound),
    }


def _reference_forward(x, params):
    """Pure-JAX reference (LayerNorm -> LSTM -> tanh)."""
    gamma, beta = params["gamma"], params["beta"]
    w_ih, w_hh = params["w_ih"], params["w_hh"]
    b = params["b_ih"] + params["b_hh"]
    x = x.astype(jnp.float32)
    mean = jnp.mean(x, axis=-1, keepdims=True)
    var = jnp.mean((x - mean) ** 2, axis=-1, keepdims=True)
    xn = (x - mean) / jnp.sqrt(var + 1e-5) * gamma + beta
    B, T, F = x.shape
    H = w_hh.shape[1]

    def step(carry, xt):
        h, c = carry
        gates = xt @ w_ih.T + h @ w_hh.T + b
        i = jax.nn.sigmoid(gates[:, 0 * H:1 * H])
        f = jax.nn.sigmoid(gates[:, 1 * H:2 * H])
        g = jnp.tanh(gates[:, 2 * H:3 * H])
        o = jax.nn.sigmoid(gates[:, 3 * H:4 * H])
        c = f * c + i * g
        h = o * jnp.tanh(c)
        return (h, c), h

    init = (jnp.zeros((B, H), jnp.float32), jnp.zeros((B, H), jnp.float32))
    _, hs = jax.lax.scan(step, init, jnp.transpose(xn, (1, 0, 2)))
    return jnp.tanh(jnp.transpose(hs, (1, 0, 2)))


if __name__ == "__main__":
    B, T, F, H = 4, 32, 8, 8       # batch, seq, input_feature, hidden_feature
    key = jax.random.PRNGKey(0)
    kx, kp = jax.random.split(key)
    x = jax.random.normal(kx, (B, T, F), jnp.float32)
    params = init_params(kp, input_feature=F, hidden_feature=H)

    ref = _reference_forward(x, params)

    # f32 validation path (f32 matmuls + f32 pregates): tight tolerance.
    out_f32 = jax.block_until_ready(
        lstm_cell_forward(x, params, matmul_dtype=jnp.float32))
    assert out_f32.shape == (B, T, H)
    assert jnp.allclose(out_f32, ref, atol=2e-4, rtol=2e-4), "f32 path mismatch"

    # Default fast path: bf16 matmuls + bf16 pregates (f32 gate/state math).
    out_bf16 = jax.block_until_ready(lstm_cell_forward(x, params))
    assert out_bf16.shape == (B, T, H)
    assert float(jnp.max(jnp.abs(out_bf16 - ref))) < 1e-1, "bf16 path mismatch"

    # Multiple batch blocks: exercises the per-block h/c scratch and the
    # "parallel" batch axis that shards across v7x's two TensorCores.
    out_nb2 = jax.block_until_ready(
        lstm_cell_forward(x, params, num_batch_blocks=2))
    assert out_nb2.shape == (B, T, H)
    assert float(jnp.max(jnp.abs(out_nb2 - ref))) < 1e-1, "batch-block mismatch"

    print("KERNEL_OK")
</pallas_src>

<mosaic_0001>
module attributes {stable_mosaic.version = 11 : i64} {
  func.func @_copy(%arg0: i32, %arg1: memref<8x128xf32, #tpu.memory_space<vmem>>, %arg2: memref<8x128xf32, #tpu.memory_space<vmem>>) attributes {dimension_semantics = [#tpu.dimension_semantics<arbitrary>], iteration_bounds = array<i64: 2>, scalar_prefetch = 0 : i64, scratch_operands = 0 : i64, tpu.core_type = #tpu.core_type<tc>, window_params = [{pipeline_mode = #tpu.pipeline_mode<synchronous>, transform_indices = @transform_0, window_bounds = array<i64: 8, 128>}, {pipeline_mode = #tpu.pipeline_mode<synchronous>, transform_indices = @transform_1, window_bounds = array<i64: 8, 128>}]} {
    %c0 = arith.constant 0 : index
    %c0_0 = arith.constant 0 : index
    %0 = vector.load %arg1[%c0, %c0_0] : memref<8x128xf32, #tpu.memory_space<vmem>>, vector<8x128xf32>
    %cst = arith.constant 0.000000e+00 : f32
    %1 = vector.broadcast %cst : f32 to vector<8x128xf32>
    %2 = arith.addf %0, %1 : vector<8x128xf32>
    %c0_1 = arith.constant 0 : index
    %c0_2 = arith.constant 0 : index
    %3 = vector.load %arg2[%c0_1, %c0_2] : memref<8x128xf32, #tpu.memory_space<vmem>>, vector<8x128xf32>
    tpu.vector_store %arg2[%c0_1, %c0_2], %2 {strides = array<i32>} : memref<8x128xf32, #tpu.memory_space<vmem>>, vector<8x128xf32>,
    return
  }
  func.func @transform_0(%arg0: i32) -> (i32, i32) {
    %c0_i32 = arith.constant 0 : i32
    %c0_i32_0 = arith.constant 0 : i32
    %c0_i32_1 = arith.constant 0 : i32
    return %c0_i32, %c0_i32_0 : i32, i32
  }
  func.func @transform_1(%arg0: i32) -> (i32, i32) {
    %c0_i32 = arith.constant 0 : i32
    %c0_i32_0 = arith.constant 0 : i32
    %c0_i32_1 = arith.constant 0 : i32
    return %c0_i32, %c0_i32_0 : i32, i32
  }
}

module attributes {stable_mosaic.version = 11 : i64} {
  func.func @_ln_proj_kernel(%arg0: i32, %arg1: memref<128x8xf32, #tpu.memory_space<vmem>>, %arg2: memref<1x8xf32, #tpu.memory_space<vmem>>, %arg3: memref<1x8xf32, #tpu.memory_space<vmem>>, %arg4: memref<8x512xf32, #tpu.memory_space<vmem>>, %arg5: memref<1x512xf32, #tpu.memory_space<vmem>>, %arg6: memref<128x512xf32, #tpu.memory_space<vmem>>) attributes {dimension_semantics = [#tpu.dimension_semantics<parallel>], iteration_bounds = array<i64: 1>, scalar_prefetch = 0 : i64, scratch_operands = 0 : i64, tpu.core_type = #tpu.core_type<tc>, window_params = [{transform_indices = @transform_0, window_bounds = array<i64: 128, 8>}, {pipeline_mode = #tpu.pipeline_mode<synchronous>, transform_indices = @transform_1, window_bounds = array<i64: 1, 8>}, {pipeline_mode = #tpu.pipeline_mode<synchronous>, transform_indices = @transform_2, window_bounds = array<i64: 1, 8>}, {pipeline_mode = #tpu.pipeline_mode<synchronous>, transform_indices = @transform_3, window_bounds = array<i64: 8, 512>}, {pipeline_mode = #tpu.pipeline_mode<synchronous>, transform_indices = @transform_4, window_bounds = array<i64: 1, 512>}, {transform_indices = @transform_5, window_bounds = array<i64: 128, 512>}]} {
    %c0 = arith.constant 0 : index
    %c0_0 = arith.constant 0 : index
    %0 = vector.load %arg1[%c0, %c0_0] : memref<128x8xf32, #tpu.memory_space<vmem>>, vector<128x8xf32>
    %cst = arith.constant dense<0.000000e+00> : vector<128xf32>
    %1 = vector.multi_reduction <add>, %0, %cst [1] : vector<128x8xf32> to vector<128xf32>
    %2 = vector.shape_cast %1 : vector<128xf32> to vector<128x1xf32>
    %cst_1 = arith.constant 8.000000e+00 : f32
    %3 = vector.broadcast %cst_1 : f32 to vector<128x1xf32>
    %4 = arith.divf %2, %3 : vector<128x1xf32>
    %5 = vector.broadcast %4 : vector<128x1xf32> to vector<128x8xf32>
    %6 = arith.subf %0, %5 : vector<128x8xf32>
    %7 = arith.mulf %6, %6 : vector<128x8xf32>
    %cst_2 = arith.constant dense<0.000000e+00> : vector<128xf32>
    %8 = vector.multi_reduction <add>, %7, %cst_2 [1] : vector<128x8xf32> to vector<128xf32>
    %9 = vector.shape_cast %8 : vector<128xf32> to vector<128x1xf32>
    %cst_3 = arith.constant 8.000000e+00 : f32
    %10 = vector.broadcast %cst_3 : f32 to vector<128x1xf32>
    %11 = arith.divf %9, %10 : vector<128x1xf32>
    %cst_4 = arith.constant 9.99999974E-6 : f32
    %12 = vector.broadcast %cst_4 : f32 to vector<128x1xf32>
    %13 = arith.addf %11, %12 : vector<128x1xf32>
    %14 = math.rsqrt %13 : vector<128x1xf32>
    %15 = vector.broadcast %14 : vector<128x1xf32> to vector<128x8xf32>
    %16 = arith.mulf %6, %15 : vector<128x8xf32>
    %c0_5 = arith.constant 0 : index
    %c0_6 = arith.constant 0 : index
    %17 = vector.load %arg2[%c0_5, %c0_6] : memref<1x8xf32, #tpu.memory_space<vmem>>, vector<1x8xf32>
    %18 = vector.broadcast %17 : vector<1x8xf32> to vector<128x8xf32>
    %19 = arith.mulf %16, %18 : vector<128x8xf32>
    %c0_7 = arith.constant 0 : index
    %c0_8 = arith.constant 0 : index
    %20 = vector.load %arg3[%c0_7, %c0_8] : memref<1x8xf32, #tpu.memory_space<vmem>>, vector<1x8xf32>
    %21 = vector.broadcast %20 : vector<1x8xf32> to vector<128x8xf32>
    %22 = arith.addf %19, %21 : vector<128x8xf32>
    %c0_9 = arith.constant 0 : index
    %c0_10 = arith.constant 0 : index
    %23 = vector.load %arg4[%c0_9, %c0_10] : memref<8x512xf32, #tpu.memory_space<vmem>>, vector<8x512xf32>
    %cst_11 = arith.constant dense<0.000000e+00> : vector<128x512xf32>
    %24 = tpu.matmul %22, %23, %cst_11 {dimension_numbers = #tpu.dot_dimension_numbers<[1], [0], [0], [1], [0, 0, 1, 1], [], []>} : vector<128x8xf32>, vector<8x512xf32>, vector<128x512xf32> -> vector<128x512xf32>
    %c0_12 = arith.constant 0 : index
    %c0_13 = arith.constant 0 : index
    %25 = vector.load %arg5[%c0_12, %c0_13] : memref<1x512xf32, #tpu.memory_space<vmem>>, vector<1x512xf32>
    %26 = vector.broadcast %25 : vector<1x512xf32> to vector<128x512xf32>
    %27 = arith.addf %24, %26 : vector<128x512xf32>
    %c0_14 = arith.constant 0 : index
    %c0_15 = arith.constant 0 : index
    %28 = vector.load %arg6[%c0_14, %c0_15] : memref<128x512xf32, #tpu.memory_space<vmem>>, vector<128x512xf32>
    tpu.vector_store %arg6[%c0_14, %c0_15], %27 {strides = array<i32>} : memref<128x512xf32, #tpu.memory_space<vmem>>, vector<128x512xf32>,
    return
  }
  func.func @transform_0(%arg0: i32) -> (i32, i32) {
    %c0_i32 = arith.constant 0 : i32
    %c0_i32_0 = arith.constant 0 : i32
    return %arg0, %c0_i32 : i32, i32
  }
  func.func @transform_1(%arg0: i32) -> (i32, i32) {
    %c0_i32 = arith.constant 0 : i32
    %c0_i32_0 = arith.constant 0 : i32
    %c0_i32_1 = arith.constant 0 : i32
    return %c0_i32, %c0_i32_0 : i32, i32
  }
  func.func @transform_2(%arg0: i32) -> (i32, i32) {
    %c0_i32 = arith.constant 0 : i32
    %c0_i32_0 = arith.constant 0 : i32
    %c0_i32_1 = arith.constant 0 : i32
    return %c0_i32, %c0_i32_0 : i32, i32
  }
  func.func @transform_3(%arg0: i32) -> (i32, i32) {
    %c0_i32 = arith.constant 0 : i32
    %c0_i32_0 = arith.constant 0 : i32
    %c0_i32_1 = arith.constant 0 : i32
    return %c0_i32, %c0_i32_0 : i32, i32
  }
  func.func @transform_4(%arg0: i32) -> (i32, i32) {
    %c0_i32 = arith.constant 0 : i32
    %c0_i32_0 = arith.constant 0 : i32
    %c0_i32_1 = arith.constant 0 : i32
    return %c0_i32, %c0_i32_0 : i32, i32
  }
  func.func @transform_5(%arg0: i32) -> (i32, i32) {
    %c0_i32 = arith.constant 0 : i32
    %c0_i32_0 = arith.constant 0 : i32
    return %arg0, %c0_i32 : i32, i32
  }
}

</mosaic_0001>

<llo_original>
// kernel: tpu_custom_call.1
$region0: #{tpu_custom_call.1}
  #allocation0 [shape = 'u32[]', space=smem, size = 0x4, offset = 0x4, fixed_abs, tag = 'smem constant byte address 0x4 - core index']
  #allocation1 [shape = 'u32[144,128]{1,0:T(1,128)}', space=vmem, size = 0x12000, scoped, tag = 'internal scratch']
  %s0 = inlined_call_operand.hbm [shape: f32[8,128], index: 0, kind: input, shape index: {}]
  %s1 = inlined_call_operand.hbm [shape: f32[8,128], index: 1, kind: output, shape index: {}]
  %s2 = sld [smem:[#allocation0]]
  $region41: #{tpu_custom_call.1} parent=0
    _
  %s4 = ssub.s32 1, %s2
  %s5 = scalar_select 0, %s4, %s2
  $region1: #{tpu_custom_call.1} parent=0
    #allocation2 [shape = 'u8[4096]{0}', space=vmem, size = 0x1000, scoped, tag = 'input window, operand 0, single buffered']
    #allocation3 [shape = 's32[2]{0}', space=sflag, size = 0x8, scoped, tag = 'scoped memory for tpu_custom_call.1']
    #allocation4 [shape = 's32[2]{0}', space=sflag, size = 0x8, scoped, tag = 'scoped memory for tpu_custom_call.1']
    #allocation5 [shape = 'u8[4096]{0}', space=vmem, size = 0x1000, scoped, tag = 'output window, operand 0, single buffered']
    %6 = vsyncpa [#allocation3], 0
    %7 = vsyncpa [#allocation4], 0
    loop: start=0, step=1, limit=4
    $region2: #{tpu_custom_call.1} parent=1 // loop_pre_header
      _
    $region3: #{tpu_custom_call.1} parent=1 // loop_header
      %s9 = sphi 0, %s13
      %p10 = scmp.ge.s32.totalorder %s9, 4
      %s17 = sphi 0, %s17
      %s19 = sphi 0, %s17
      %s20 = sphi 0, %s19
      %s34 = sphi 0, %s20
      %s38 = sphi 0, %s38
      %s40 = sphi 0, %s38
      %s41 = sphi 0, %s40
      %s55 = sphi 0, %s41
    $region4: #{tpu_custom_call.1} parent=1 // loop_header_branch
      %12 = sbr.rel (%p10) target = $region8
    $region5: #{tpu_custom_call.1} parent=1 // loop_body
      %s14 = ssub.s32 %s9, 1
      %s15 = ssub.s32 %s9, 2
      %s16 = sadd.s32 %s9, 1
      %s18 = sadd.s32 %s17, 1
      %p21 = scmp.eq.s32.totalorder %s9, 1
      %p22 = scmp.ne.s32.totalorder %s17, %s19
      %p23 = scmp.eq.s32.totalorder %s9, 0
      %p24 = por %p22, %p23
      %p25 = scmp.ne.s32.totalorder %s17, %s19
      %p26 = scmp.eq.s32.totalorder %s14, 1
      %p27 = por %p25, %p26
      %p28 = scmp.ne.s32.totalorder %s19, %s20
      %p29 = scmp.eq.s32.totalorder %s14, 0
      %p30 = por %p28, %p29
      %p31 = scmp.ne.s32.totalorder %s19, %s20
      %p32 = scmp.eq.s32.totalorder %s15, 1
      %p33 = por %p31, %p32
      %p35 = scmp.ne.s32.totalorder %s20, %s34
      %p36 = scmp.eq.s32.totalorder %s15, 0
      %p37 = por %p35, %p36
      %s39 = sadd.s32 %s38, 1
      %p42 = scmp.eq.s32.totalorder %s9, 1
      %p43 = scmp.ne.s32.totalorder %s38, %s40
      %p44 = scmp.eq.s32.totalorder %s9, 0
      %p45 = por %p43, %p44
      %p46 = scmp.ne.s32.totalorder %s38, %s40
      %p47 = scmp.eq.s32.totalorder %s14, 1
      %p48 = por %p46, %p47
      %p49 = scmp.ne.s32.totalorder %s40, %s41
      %p50 = scmp.eq.s32.totalorder %s14, 0
      %p51 = por %p49, %p50
      %p52 = scmp.ne.s32.totalorder %s40, %s41
      %p53 = scmp.eq.s32.totalorder %s15, 1
      %p54 = por %p52, %p53
      %p56 = scmp.ne.s32.totalorder %s41, %s55
      %p57 = scmp.eq.s32.totalorder %s15, 0
      %p58 = por %p56, %p57
      %p59 = scmp.le.s32.totalorder 1, %s9
      %p60 = scmp.lt.s32.totalorder %s9, 3
      %p61 = pnand %p59, %p60
      %p62 = pneg %p61
      // Predicated region
      $region9: #{tpu_custom_call.1} parent=5 // pred_check
        _
      $region10: #{tpu_custom_call.1} parent=5 // pred_check_branch
        %64 = sbr.rel (%p61) target = $region12
      $region11: #{tpu_custom_call.1} parent=5 // pred_region
        %s65 = ssub.s32 %s9, 1
        // Predicated region
        $region13: #{tpu_custom_call.1} parent=11 // pred_check
          %p66 = pneg %p30
        $region14: #{tpu_custom_call.1} parent=11 // pred_check_branch
          %68 = sbr.rel (%p66) target = $region16
        $region15: #{tpu_custom_call.1} parent=11 // pred_region
          %s70 = ssub.s32 128, 128
          %71 = vsyncadd [#allocation3], %s70
          %s73 = sshll.u32 [#allocation2], 4
          %s74 = int_to_ptr.vmem [resolvable:$true] %s73
          %76 = dma.hbm_to_vmem [thread:$0]  %s0, 128, %s74, [#allocation3]
        $region16: #{tpu_custom_call.1} parent=11 // pred_fallthru
          _
      $region12: #{tpu_custom_call.1} parent=5 // pred_fallthru
        _
      %p77 = scmp.lt.s32.totalorder %s9, 2
      // Predicated region
      $region17: #{tpu_custom_call.1} parent=5 // pred_check
        %p78 = pneg %p77
      $region18: #{tpu_custom_call.1} parent=5 // pred_check_branch
        %80 = sbr.rel (%p78) target = $region20
      $region19: #{tpu_custom_call.1} parent=5 // pred_region
        _
      $region20: #{tpu_custom_call.1} parent=5 // pred_fallthru
        _
      %p81 = scmp.le.s32.totalorder 1, %s9
      %p82 = scmp.lt.s32.totalorder %s9, 3
      %p83 = pnand %p81, %p82
      %p84 = pneg %p83
      // Predicated region
      $region21: #{tpu_custom_call.1} parent=5 // pred_check
        _
      $region22: #{tpu_custom_call.1} parent=5 // pred_check_branch
        %86 = sbr.rel (%p83) target = $region24
      $region23: #{tpu_custom_call.1} parent=5 // pred_region
        %s87 = ssub.s32 %s9, 1
        // Predicated region
        $region25: #{tpu_custom_call.1} parent=23 // pred_check
          %p88 = pneg %p30
        $region26: #{tpu_custom_call.1} parent=23 // pred_check_branch
          %90 = sbr.rel (%p88) target = $region28
        $region27: #{tpu_custom_call.1} parent=23 // pred_region
          %91 = dma.done [#allocation3], 128
        $region28: #{tpu_custom_call.1} parent=23 // pred_fallthru
          _
        %p92 = pneg %p30
        %p93 = pneg %p27
        %p94 = pneg %p51
        %p95 = pneg %p48
        %v96 = vld [vmem:[#allocation2] sm:$0xff]
        %v97 = vadd.f32 %v96, 0.0
        %98 = vst [vmem:[#allocation5] sm:$0xff] %v97
        // Predicated region
        $region29: #{tpu_custom_call.1} parent=23 // pred_check
          %p99 = pneg %p48
        $region30: #{tpu_custom_call.1} parent=23 // pred_check_branch
          %101 = sbr.rel (%p99) target = $region32
        $region31: #{tpu_custom_call.1} parent=23 // pred_region
          %s103 = ssub.s32 128, 128
          %104 = vsyncadd [#allocation4], %s103
          %s106 = sshll.u32 [#allocation5], 4
          %s107 = int_to_ptr.vmem [resolvable:$true] %s106
          %109 = dma.vmem_to_hbm [thread:$0]  %s107, 128, %s1, [#allocation4]
        $region32: #{tpu_custom_call.1} parent=23 // pred_fallthru
          _
        // Predicated region
        $region33: #{tpu_custom_call.1} parent=23 // pred_check
          %p110 = pneg %p48
        $region34: #{tpu_custom_call.1} parent=23 // pred_check_branch
          %112 = sbr.rel (%p110) target = $region36
        $region35: #{tpu_custom_call.1} parent=23 // pred_region
          %113 = dma.done [#allocation4], 128
        $region36: #{tpu_custom_call.1} parent=23 // pred_fallthru
          _
      $region24: #{tpu_custom_call.1} parent=5 // pred_fallthru
        _
      %p114 = scmp.le.s32.totalorder 2, %s9
      // Predicated region
      $region37: #{tpu_custom_call.1} parent=5 // pred_check
        %p115 = pneg %p114
      $region38: #{tpu_custom_call.1} parent=5 // pred_check_branch
        %117 = sbr.rel (%p115) target = $region40
      $region39: #{tpu_custom_call.1} parent=5 // pred_region
        %s118 = ssub.s32 %s9, 2
      $region40: #{tpu_custom_call.1} parent=5 // pred_fallthru
        _
    $region6: #{tpu_custom_call.1} parent=1 // loop_footer
      %s13 = sadd.s32 1, %s9
    $region7: #{tpu_custom_call.1} parent=1 // loop_footer_branch
      %8 = sbr.rel target = $region3
    $region8: #{tpu_custom_call.1} parent=1 // loop_exit
      _
    %119 = vsyncpa [#allocation3], 1
    %s120 = scalar_lea.sflag [#allocation3], 1
    %121 = vsyncpa %s120, 1
    %122 = vsyncpa [#allocation4], 1
    %s123 = scalar_lea.sflag [#allocation4], 1
    %124 = vsyncpa %s123, 1

// kernel: tpu_custom_call.1
$region0: #{tpu_custom_call.1}
  #allocation0 [shape = 'u32[]', space=smem, size = 0x4, offset = 0x4, fixed_abs, tag = 'smem constant byte address 0x4 - core index']
  #allocation1 [shape = 'u32[144,128]{1,0:T(1,128)}', space=vmem, size = 0x12000, scoped, tag = 'internal scratch']
  %s0 = inlined_call_operand.vmem [shape: f32[128,8], index: 0, kind: input, shape index: {}]
  %s1 = inlined_call_operand.vmem [shape: f32[1,8], index: 1, kind: input, shape index: {}]
  %s2 = inlined_call_operand.vmem [shape: f32[1,8], index: 2, kind: input, shape index: {}]
  %s3 = inlined_call_operand.vmem [shape: f32[8,512], index: 3, kind: input, shape index: {}]
  %s4 = inlined_call_operand.vmem [shape: f32[1,512], index: 4, kind: input, shape index: {}]
  %s5 = inlined_call_operand.hbm [shape: f32[128,512], index: 5, kind: output, shape index: {}]
  %s6 = sld [smem:[#allocation0]]
  $region30: #{tpu_custom_call.1} parent=0
    _
  %s8 = ssub.s32 1, %s6
  %s9 = scalar_select 0, %s8, %s6
  $region1: #{tpu_custom_call.1} parent=0
    #allocation2 [shape = 'u8[262144]{0}', space=vmem, size = 0x40000, scoped, tag = 'output window, operand 0, single buffered']
    #allocation3 [shape = 's32[1]{0}', space=sflag, size = 0x4, scoped, tag = 'scoped memory for tpu_custom_call.1']
    %10 = vsyncpa [#allocation3], 0
    // Predicated region
    $region2: #{tpu_custom_call.1} parent=1 // pred_check
      _
    $region3: #{tpu_custom_call.1} parent=1 // pred_check_branch
      %12 = sbr.rel (0) target = $region5
    $region4: #{tpu_custom_call.1} parent=1 // pred_region
      _
    $region5: #{tpu_custom_call.1} parent=1 // pred_fallthru
      _
    // Predicated region
    $region6: #{tpu_custom_call.1} parent=1 // pred_check
      _
    $region7: #{tpu_custom_call.1} parent=1 // pred_check_branch
      %14 = sbr.rel (0) target = $region9
    $region8: #{tpu_custom_call.1} parent=1 // pred_region
      _
    $region9: #{tpu_custom_call.1} parent=1 // pred_fallthru
      _
    // Predicated region
    $region10: #{tpu_custom_call.1} parent=1 // pred_check
      _
    $region11: #{tpu_custom_call.1} parent=1 // pred_check_branch
      %16 = sbr.rel (0) target = $region13
    $region12: #{tpu_custom_call.1} parent=1 // pred_region
      _
    $region13: #{tpu_custom_call.1} parent=1 // pred_fallthru
      _
    // Predicated region
    $region14: #{tpu_custom_call.1} parent=1 // pred_check
      _
    $region15: #{tpu_custom_call.1} parent=1 // pred_check_branch
      %18 = sbr.rel (0) target = $region17
    $region16: #{tpu_custom_call.1} parent=1 // pred_region
      _
    $region17: #{tpu_custom_call.1} parent=1 // pred_fallthru
      _
    // Predicated region
    $region18: #{tpu_custom_call.1} parent=1 // pred_check
      _
    $region19: #{tpu_custom_call.1} parent=1 // pred_check_branch
      %20 = sbr.rel (0) target = $region21
    $region20: #{tpu_custom_call.1} parent=1 // pred_region
      _
    $region21: #{tpu_custom_call.1} parent=1 // pred_fallthru
      _
    %v21 = vld [vmem:[%s0] sm:$0xff]
    %v22 = vld [vmem:[%s0 + $0x8] sm:$0xff]
    %v23 = vld [vmem:[%s0 + $0x10] sm:$0xff]
    %v24 = vld [vmem:[%s0 + $0x18] sm:$0xff]
    %v25 = vld [vmem:[%s0 + $0x20] sm:$0xff]
    %v26 = vld [vmem:[%s0 + $0x28] sm:$0xff]
    %v27 = vld [vmem:[%s0 + $0x30] sm:$0xff]
    %v28 = vld [vmem:[%s0 + $0x38] sm:$0xff]
    %v29 = vld [vmem:[%s0 + $0x40] sm:$0xff]
    %v30 = vld [vmem:[%s0 + $0x48] sm:$0xff]
    %v31 = vld [vmem:[%s0 + $0x50] sm:$0xff]
    %v32 = vld [vmem:[%s0 + $0x58] sm:$0xff]
    %v33 = vld [vmem:[%s0 + $0x60] sm:$0xff]
    %v34 = vld [vmem:[%s0 + $0x68] sm:$0xff]
    %v35 = vld [vmem:[%s0 + $0x70] sm:$0xff]
    %v36 = vld [vmem:[%s0 + $0x78] sm:$0xff]
    %vm37 = vcmask 64512
    %v38 = vsel %vm37, %v21, 0.0
    %39 = vadd.xlane.f32.xlu0 %v38
    %v40 = vpop.xlane.xlu0 %39
    %v41 = vsel %vm37, %v22, 0.0
    %42 = vadd.xlane.f32.xlu0 %v41
    %v43 = vpop.xlane.xlu0 %42
    %v44 = vsel %vm37, %v23, 0.0
    %45 = vadd.xlane.f32.xlu0 %v44
    %v46 = vpop.xlane.xlu0 %45
    %v47 = vsel %vm37, %v24, 0.0
    %48 = vadd.xlane.f32.xlu0 %v47
    %v49 = vpop.xlane.xlu0 %48
    %v50 = vsel %vm37, %v25, 0.0
    %51 = vadd.xlane.f32.xlu0 %v50
    %v52 = vpop.xlane.xlu0 %51
    %v53 = vsel %vm37, %v26, 0.0
    %54 = vadd.xlane.f32.xlu0 %v53
    %v55 = vpop.xlane.xlu0 %54
    %v56 = vsel %vm37, %v27, 0.0
    %57 = vadd.xlane.f32.xlu0 %v56
    %v58 = vpop.xlane.xlu0 %57
    %v59 = vsel %vm37, %v28, 0.0
    %60 = vadd.xlane.f32.xlu0 %v59
    %v61 = vpop.xlane.xlu0 %60
    %v62 = vsel %vm37, %v29, 0.0
    %63 = vadd.xlane.f32.xlu0 %v62
    %v64 = vpop.xlane.xlu0 %63
    %v65 = vsel %vm37, %v30, 0.0
    %66 = vadd.xlane.f32.xlu0 %v65
    %v67 = vpop.xlane.xlu0 %66
    %v68 = vsel %vm37, %v31, 0.0
    %69 = vadd.xlane.f32.xlu0 %v68
    %v70 = vpop.xlane.xlu0 %69
    %v71 = vsel %vm37, %v32, 0.0
    %72 = vadd.xlane.f32.xlu0 %v71
    %v73 = vpop.xlane.xlu0 %72
    %v74 = vsel %vm37, %v33, 0.0
    %75 = vadd.xlane.f32.xlu0 %v74
    %v76 = vpop.xlane.xlu0 %75
    %v77 = vsel %vm37, %v34, 0.0
    %78 = vadd.xlane.f32.xlu0 %v77
    %v79 = vpop.xlane.xlu0 %78
    %v80 = vsel %vm37, %v35, 0.0
    %81 = vadd.xlane.f32.xlu0 %v80
    %v82 = vpop.xlane.xlu0 %81
    %v83 = vsel %vm37, %v36, 0.0
    %84 = vadd.xlane.f32.xlu0 %v83
    %v85 = vpop.xlane.xlu0 %84
    %v86 = vrcp.pop 8.0
    %v87 = vmul.f32 %v40, %v86
    %v88 = vmul.f32 %v43, %v86
    %v89 = vmul.f32 %v46, %v86
    %v90 = vmul.f32 %v49, %v86
    %v91 = vmul.f32 %v52, %v86
    %v92 = vmul.f32 %v55, %v86
    %v93 = vmul.f32 %v58, %v86
    %v94 = vmul.f32 %v61, %v86
    %v95 = vmul.f32 %v64, %v86
    %v96 = vmul.f32 %v67, %v86
    %v97 = vmul.f32 %v70, %v86
    %v98 = vmul.f32 %v73, %v86
    %v99 = vmul.f32 %v76, %v86
    %v100 = vmul.f32 %v79, %v86
    %v101 = vmul.f32 %v82, %v86
    %v102 = vmul.f32 %v85, %v86
    %v103 = vsub.f32 %v21, %v87
    %v104 = vsub.f32 %v22, %v88
    %v105 = vsub.f32 %v23, %v89
    %v106 = vsub.f32 %v24, %v90
    %v107 = vsub.f32 %v25, %v91
    %v108 = vsub.f32 %v26, %v92
    %v109 = vsub.f32 %v27, %v93
    %v110 = vsub.f32 %v28, %v94
    %v111 = vsub.f32 %v29, %v95
    %v112 = vsub.f32 %v30, %v96
    %v113 = vsub.f32 %v31, %v97
    %v114 = vsub.f32 %v32, %v98
    %v115 = vsub.f32 %v33, %v99
    %v116 = vsub.f32 %v34, %v100
    %v117 = vsub.f32 %v35, %v101
    %v118 = vsub.f32 %v36, %v102
    %v119 = vmul.f32 %v103, %v103
    %v120 = vmul.f32 %v104, %v104
    %v121 = vmul.f32 %v105, %v105
    %v122 = vmul.f32 %v106, %v106
    %v123 = vmul.f32 %v107, %v107
    %v124 = vmul.f32 %v108, %v108
    %v125 = vmul.f32 %v109, %v109
    %v126 = vmul.f32 %v110, %v110
    %v127 = vmul.f32 %v111, %v111
    %v128 = vmul.f32 %v112, %v112
    %v129 = vmul.f32 %v113, %v113
    %v130 = vmul.f32 %v114, %v114
    %v131 = vmul.f32 %v115, %v115
    %v132 = vmul.f32 %v116, %v116
    %v133 = vmul.f32 %v117, %v117
    %v134 = vmul.f32 %v118, %v118
    %v135 = vsel %vm37, %v119, 0.0
    %136 = vadd.xlane.f32.xlu0 %v135
    %v137 = vpop.xlane.xlu0 %136
    %v138 = vsel %vm37, %v120, 0.0
    %139 = vadd.xlane.f32.xlu0 %v138
    %v140 = vpop.xlane.xlu0 %139
    %v141 = vsel %vm37, %v121, 0.0
    %142 = vadd.xlane.f32.xlu0 %v141
    %v143 = vpop.xlane.xlu0 %142
    %v144 = vsel %vm37, %v122, 0.0
    %145 = vadd.xlane.f32.xlu0 %v144
    %v146 = vpop.xlane.xlu0 %145
    %v147 = vsel %vm37, %v123, 0.0
    %148 = vadd.xlane.f32.xlu0 %v147
    %v149 = vpop.xlane.xlu0 %148
    %v150 = vsel %vm37, %v124, 0.0
    %151 = vadd.xlane.f32.xlu0 %v150
    %v152 = vpop.xlane.xlu0 %151
    %v153 = vsel %vm37, %v125, 0.0
    %154 = vadd.xlane.f32.xlu0 %v153
    %v155 = vpop.xlane.xlu0 %154
    %v156 = vsel %vm37, %v126, 0.0
    %157 = vadd.xlane.f32.xlu0 %v156
    %v158 = vpop.xlane.xlu0 %157
    %v159 = vsel %vm37, %v127, 0.0
    %160 = vadd.xlane.f32.xlu0 %v159
    %v161 = vpop.xlane.xlu0 %160
    %v162 = vsel %vm37, %v128, 0.0
    %163 = vadd.xlane.f32.xlu0 %v162
    %v164 = vpop.xlane.xlu0 %163
    %v165 = vsel %vm37, %v129, 0.0
    %166 = vadd.xlane.f32.xlu0 %v165
    %v167 = vpop.xlane.xlu0 %166
    %v168 = vsel %vm37, %v130, 0.0
    %169 = vadd.xlane.f32.xlu0 %v168
    %v170 = vpop.xlane.xlu0 %169
    %v171 = vsel %vm37, %v131, 0.0
    %172 = vadd.xlane.f32.xlu0 %v171
    %v173 = vpop.xlane.xlu0 %172
    %v174 = vsel %vm37, %v132, 0.0
    %175 = vadd.xlane.f32.xlu0 %v174
    %v176 = vpop.xlane.xlu0 %175
    %v177 = vsel %vm37, %v133, 0.0
    %178 = vadd.xlane.f32.xlu0 %v177
    %v179 = vpop.xlane.xlu0 %178
    %v180 = vsel %vm37, %v134, 0.0
    %181 = vadd.xlane.f32.xlu0 %v180
    %v182 = vpop.xlane.xlu0 %181
    %v183 = vmul.f32 %v137, %v86
    %v184 = vmul.f32 %v140, %v86
    %v185 = vmul.f32 %v143, %v86
    %v186 = vmul.f32 %v146, %v86
    %v187 = vmul.f32 %v149, %v86
    %v188 = vmul.f32 %v152, %v86
    %v189 = vmul.f32 %v155, %v86
    %v190 = vmul.f32 %v158, %v86
    %v191 = vmul.f32 %v161, %v86
    %v192 = vmul.f32 %v164, %v86
    %v193 = vmul.f32 %v167, %v86
    %v194 = vmul.f32 %v170, %v86
    %v195 = vmul.f32 %v173, %v86
    %v196 = vmul.f32 %v176, %v86
    %v197 = vmul.f32 %v179, %v86
    %v198 = vmul.f32 %v182, %v86
    %v199 = vadd.f32 %v183, 1e-05
    %v200 = vadd.f32 %v184, 1e-05
    %v201 = vadd.f32 %v185, 1e-05
    %v202 = vadd.f32 %v186, 1e-05
    %v203 = vadd.f32 %v187, 1e-05
    %v204 = vadd.f32 %v188, 1e-05
    %v205 = vadd.f32 %v189, 1e-05
    %v206 = vadd.f32 %v190, 1e-05
    %v207 = vadd.f32 %v191, 1e-05
    %v208 = vadd.f32 %v192, 1e-05
    %v209 = vadd.f32 %v193, 1e-05
    %v210 = vadd.f32 %v194, 1e-05
    %v211 = vadd.f32 %v195, 1e-05
    %v212 = vadd.f32 %v196, 1e-05
    %v213 = vadd.f32 %v197, 1e-05
    %v214 = vadd.f32 %v198, 1e-05
    %v215 = vrsqrt.pop %v199
    %v216 = vrsqrt.pop %v200
    %v217 = vrsqrt.pop %v201
    %v218 = vrsqrt.pop %v202
    %v219 = vrsqrt.pop %v203
    %v220 = vrsqrt.pop %v204
    %v221 = vrsqrt.pop %v205
    %v222 = vrsqrt.pop %v206
    %v223 = vrsqrt.pop %v207
    %v224 = vrsqrt.pop %v208
    %v225 = vrsqrt.pop %v209
    %v226 = vrsqrt.pop %v210
    %v227 = vrsqrt.pop %v211
    %v228 = vrsqrt.pop %v212
    %v229 = vrsqrt.pop %v213
    %v230 = vrsqrt.pop %v214
    %v231 = vmul.f32 %v103, %v215
    %v232 = vmul.f32 %v104, %v216
    %v233 = vmul.f32 %v105, %v217
    %v234 = vmul.f32 %v106, %v218
    %v235 = vmul.f32 %v107, %v219
    %v236 = vmul.f32 %v108, %v220
    %v237 = vmul.f32 %v109, %v221
    %v238 = vmul.f32 %v110, %v222
    %v239 = vmul.f32 %v111, %v223
    %v240 = vmul.f32 %v112, %v224
    %v241 = vmul.f32 %v113, %v225
    %v242 = vmul.f32 %v114, %v226
    %v243 = vmul.f32 %v115, %v227
    %v244 = vmul.f32 %v116, %v228
    %v245 = vmul.f32 %v117, %v229
    %v246 = vmul.f32 %v118, %v230
    %v247 = vld [vmem:[%s1] sm:$0x1]
    %v249 = vlaneseq
    %v250 = vshrl.u32 %v249, 7
    %v251 = vsub.s32 0, %v250
    %v252 = vrot.slane %v247, %v251
    %v254 = vmul.f32 %v231, %v252
    %v255 = vmul.f32 %v232, %v252
    %v256 = vmul.f32 %v233, %v252
    %v257 = vmul.f32 %v234, %v252
    %v258 = vmul.f32 %v235, %v252
    %v259 = vmul.f32 %v236, %v252
    %v260 = vmul.f32 %v237, %v252
    %v261 = vmul.f32 %v238, %v252
    %v262 = vmul.f32 %v239, %v252
    %v263 = vmul.f32 %v240, %v252
    %v264 = vmul.f32 %v241, %v252
    %v265 = vmul.f32 %v242, %v252
    %v266 = vmul.f32 %v243, %v252
    %v267 = vmul.f32 %v244, %v252
    %v268 = vmul.f32 %v245, %v252
    %v269 = vmul.f32 %v246, %v252
    %v270 = vld [vmem:[%s2] sm:$0x1]
    %v272 = vlaneseq
    %v273 = vshrl.u32 %v272, 7
    %v274 = vsub.s32 0, %v273
    %v275 = vrot.slane %v270, %v274
    %v277 = vadd.f32 %v254, %v275
    %v278 = vadd.f32 %v255, %v275
    %v279 = vadd.f32 %v256, %v275
    %v280 = vadd.f32 %v257, %v275
    %v281 = vadd.f32 %v258, %v275
    %v282 = vadd.f32 %v259, %v275
    %v283 = vadd.f32 %v260, %v275
    %v284 = vadd.f32 %v261, %v275
    %v285 = vadd.f32 %v262, %v275
    %v286 = vadd.f32 %v263, %v275
    %v287 = vadd.f32 %v264, %v275
    %v288 = vadd.f32 %v265, %v275
    %v289 = vadd.f32 %v266, %v275
    %v290 = vadd.f32 %v267, %v275
    %v291 = vadd.f32 %v268, %v275
    %v292 = vadd.f32 %v269, %v275
    %v293 = vld [vmem:[%s3] sm:$0xff]
    %v294 = vld [vmem:[%s3 + $0x8] sm:$0xff]
    %v295 = vld [vmem:[%s3 + $0x10] sm:$0xff]
    %v296 = vld [vmem:[%s3 + $0x18] sm:$0xff]
    %v297 = vld [vmem:[%s4] sm:$0xf]
    %v299 = vlaneseq
    %v300 = vshrl.u32 %v299, 7
    %v301 = vsub.s32 0, %v300
    %v302 = vrot.slane %v297, %v301
    %v303 = vlaneseq
    %v304 = vshrl.u32 %v303, 7
    %v305 = vsub.s32 1, %v304
    %v306 = vrot.slane %v297, %v305
    %v307 = vlaneseq
    %v308 = vshrl.u32 %v307, 7
    %v309 = vsub.s32 2, %v308
    %v310 = vrot.slane %v297, %v309
    %v311 = vlaneseq
    %v312 = vshrl.u32 %v311, 7
    %v313 = vsub.s32 3, %v312
    %v314 = vrot.slane %v297, %v313
    %v320 = vsel %vm37, %v277, 0
    %v323 = vsel %vm37, %v278, 0
    %v326 = vsel %vm37, %v279, 0
    %v329 = vsel %vm37, %v280, 0
    %v332 = vsel %vm37, %v281, 0
    %v335 = vsel %vm37, %v282, 0
    %v338 = vsel %vm37, %v283, 0
    %v341 = vsel %vm37, %v284, 0
    %v344 = vsel %vm37, %v285, 0
    %v347 = vsel %vm37, %v286, 0
    %v350 = vsel %vm37, %v287, 0
    %v353 = vsel %vm37, %v288, 0
    %v356 = vsel %vm37, %v289, 0
    %v359 = vsel %vm37, %v290, 0
    %v362 = vsel %vm37, %v291, 0
    %v365 = vsel %vm37, %v292, 0
    %367 = vmatprep.subr.mxu0 %v294
    %368 = vmatpush1.msra.mxu0 %v293
    %369 = vmatprep.subr.mxu0 0.0
    %370 = vmatpush1.msra.mxu0 0.0
    %371 = vmatprep.subr.mxu0 0.0
    %372 = vmatpush1.msra.mxu0 0.0
    %373 = vmatprep.subr.mxu0 0.0
    %374 = vmatpush1.msra.mxu0 0.0
    %375 = vmatprep.subr.mxu0 0.0
    %376 = vmatpush1.msra.mxu0 0.0
    %377 = vmatprep.subr.mxu0 0.0
    %378 = vmatpush1.msra.mxu0 0.0
    %379 = vmatprep.subr.mxu0 0.0
    %380 = vmatpush1.msra.mxu0 0.0
    %381 = vmatprep.subr.mxu0 0.0
    %382 = vmatpush1.msra.mxu0 0.0
    %383 = vmatprep.subr.mxu0 0.0
    %384 = vmatpush1.msra.mxu0 0.0
    %385 = vmatprep.subr.mxu0 0.0
    %386 = vmatpush1.msra.mxu0 0.0
    %387 = vmatprep.subr.mxu0 0.0
    %388 = vmatpush1.msra.mxu0 0.0
    %389 = vmatprep.subr.mxu0 0.0
    %390 = vmatpush1.msra.mxu0 0.0
    %391 = vmatprep.subr.mxu0 0.0
    %392 = vmatpush1.msra.mxu0 0.0
    %393 = vmatprep.subr.mxu0 0.0
    %394 = vmatpush1.msra.mxu0 0.0
    %395 = vmatprep.subr.mxu0 0.0
    %396 = vmatpush1.msra.mxu0 0.0
    %397 = vmatprep.subr.mxu0 0.0
    %398 = vmatpush1.msra.mxu0 0.0
    %399 = vmatprep.subr.mxu0 0.0
    %400 = vmatpush1.msra.mxu0 0.0
    %401 = vmatprep.subr.mxu0 0.0
    %402 = vmatpush1.msra.mxu0 0.0
    %403 = vmatprep.subr.mxu0 0.0
    %404 = vmatpush1.msra.mxu0 0.0
    %405 = vmatprep.subr.mxu0 0.0
    %406 = vmatpush1.msra.mxu0 0.0
    %407 = vmatprep.subr.mxu0 0.0
    %408 = vmatpush1.msra.mxu0 0.0
    %409 = vmatprep.subr.mxu0 0.0
    %410 = vmatpush1.msra.mxu0 0.0
    %411 = vmatprep.subr.mxu0 0.0
    %412 = vmatpush1.msra.mxu0 0.0
    %413 = vmatprep.subr.mxu0 0.0
    %414 = vmatpush1.msra.mxu0 0.0
    %415 = vmatprep.subr.mxu0 0.0
    %416 = vmatpush1.msra.mxu0 0.0
    %417 = vmatprep.subr.mxu0 0.0
    %418 = vmatpush1.msra.mxu0 0.0
    %419 = vmatprep.subr.mxu0 0.0
    %420 = vmatpush1.msra.mxu0 0.0
    %421 = vmatprep.subr.mxu0 0.0
    %422 = vmatpush1.msra.mxu0 0.0
    %423 = vmatprep.subr.mxu0 0.0
    %424 = vmatpush1.msra.mxu0 0.0
    %425 = vmatprep.subr.mxu0 0.0
    %426 = vmatpush1.msra.mxu0 0.0
    %427 = vmatprep.subr.mxu0 0.0
    %428 = vmatpush1.msra.mxu0 0.0
    %429 = vmatprep.subr.mxu0 0.0
    %430 = vmatpush1.msra.mxu0 0.0
    %431 = vmatprep.mubr.f32.mxu0 0.0
    %432 = vmatmul.mubr.f32.gmra.mrb[0].mxu0 %v320
    %v433 = vpop.f32.mrb[0].mxu0
    %v434 = vadd.f32 %v302, %v433
    %v435 = vpop.f32.mrb[0].mxu0
    %v436 = vadd.f32 %v306, %v435
    %437 = vmatprep.mubr.f32.mxu0 0.0
    %438 = vmatmul.mubr.f32.gmra.mrb[0].mxu0 %v323
    %v439 = vpop.f32.mrb[0].mxu0
    %v440 = vadd.f32 %v302, %v439
    %v441 = vpop.f32.mrb[0].mxu0
    %v442 = vadd.f32 %v306, %v441
    %443 = vmatprep.mubr.f32.mxu0 0.0
    %444 = vmatmul.mubr.f32.gmra.mrb[0].mxu0 %v326
    %v445 = vpop.f32.mrb[0].mxu0
    %v446 = vadd.f32 %v302, %v445
    %v447 = vpop.f32.mrb[0].mxu0
    %v448 = vadd.f32 %v306, %v447
    %449 = vmatprep.mubr.f32.mxu0 0.0
    %450 = vmatmul.mubr.f32.gmra.mrb[0].mxu0 %v329
    %v451 = vpop.f32.mrb[0].mxu0
    %v452 = vadd.f32 %v302, %v451
    %v453 = vpop.f32.mrb[0].mxu0
    %v454 = vadd.f32 %v306, %v453
    %455 = vmatprep.mubr.f32.mxu0 0.0
    %456 = vmatmul.mubr.f32.gmra.mrb[0].mxu0 %v332
    %v457 = vpop.f32.mrb[0].mxu0
    %v458 = vadd.f32 %v302, %v457
    %v459 = vpop.f32.mrb[0].mxu0
    %v460 = vadd.f32 %v306, %v459
    %461 = vmatprep.mubr.f32.mxu0 0.0
    %462 = vmatmul.mubr.f32.gmra.mrb[0].mxu0 %v335
    %v463 = vpop.f32.mrb[0].mxu0
    %v464 = vadd.f32 %v302, %v463
    %v465 = vpop.f32.mrb[0].mxu0
    %v466 = vadd.f32 %v306, %v465
    %467 = vmatprep.mubr.f32.mxu0 0.0
    %468 = vmatmul.mubr.f32.gmra.mrb[0].mxu0 %v338
    %v469 = vpop.f32.mrb[0].mxu0
    %v470 = vadd.f32 %v302, %v469
    %v471 = vpop.f32.mrb[0].mxu0
    %v472 = vadd.f32 %v306, %v471
    %473 = vmatprep.mubr.f32.mxu0 0.0
    %474 = vmatmul.mubr.f32.gmra.mrb[0].mxu0 %v341
    %v475 = vpop.f32.mrb[0].mxu0
    %v476 = vadd.f32 %v302, %v475
    %v477 = vpop.f32.mrb[0].mxu0
    %v478 = vadd.f32 %v306, %v477
    %479 = vmatprep.mubr.f32.mxu0 0.0
    %480 = vmatmul.mubr.f32.gmra.mrb[0].mxu0 %v344
    %v481 = vpop.f32.mrb[0].mxu0
    %v482 = vadd.f32 %v302, %v481
    %v483 = vpop.f32.mrb[0].mxu0
    %v484 = vadd.f32 %v306, %v483
    %485 = vmatprep.mubr.f32.mxu0 0.0
    %486 = vmatmul.mubr.f32.gmra.mrb[0].mxu0 %v347
    %v487 = vpop.f32.mrb[0].mxu0
    %v488 = vadd.f32 %v302, %v487
    %v489 = vpop.f32.mrb[0].mxu0
    %v490 = vadd.f32 %v306, %v489
    %491 = vmatprep.mubr.f32.mxu0 0.0
    %492 = vmatmul.mubr.f32.gmra.mrb[0].mxu0 %v350
    %v493 = vpop.f32.mrb[0].mxu0
    %v494 = vadd.f32 %v302, %v493
    %v495 = vpop.f32.mrb[0].mxu0
    %v496 = vadd.f32 %v306, %v495
    %497 = vmatprep.mubr.f32.mxu0 0.0
    %498 = vmatmul.mubr.f32.gmra.mrb[0].mxu0 %v353
    %v499 = vpop.f32.mrb[0].mxu0
    %v500 = vadd.f32 %v302, %v499
    %v501 = vpop.f32.mrb[0].mxu0
    %v502 = vadd.f32 %v306, %v501
    %503 = vmatprep.mubr.f32.mxu0 0.0
    %504 = vmatmul.mubr.f32.gmra.mrb[0].mxu0 %v356
    %v505 = vpop.f32.mrb[0].mxu0
    %v506 = vadd.f32 %v302, %v505
    %v507 = vpop.f32.mrb[0].mxu0
    %v508 = vadd.f32 %v306, %v507
    %509 = vmatprep.mubr.f32.mxu0 0.0
    %510 = vmatmul.mubr.f32.gmra.mrb[0].mxu0 %v359
    %v511 = vpop.f32.mrb[0].mxu0
    %v512 = vadd.f32 %v302, %v511
    %v513 = vpop.f32.mrb[0].mxu0
    %v514 = vadd.f32 %v306, %v513
    %515 = vmatprep.mubr.f32.mxu0 0.0
    %516 = vmatmul.mubr.f32.gmra.mrb[0].mxu0 %v362
    %v517 = vpop.f32.mrb[0].mxu0
    %v518 = vadd.f32 %v302, %v517
    %v519 = vpop.f32.mrb[0].mxu0
    %v520 = vadd.f32 %v306, %v519
    %521 = vmatprep.mubr.f32.mxu0 0.0
    %522 = vmatmul.mubr.f32.gmra.mrb[0].mxu0 %v365
    %v523 = vpop.f32.mrb[0].mxu0
    %v524 = vadd.f32 %v302, %v523
    %v525 = vpop.f32.mrb[0].mxu0
    %v526 = vadd.f32 %v306, %v525
    %527 = vdwg.mxu0
    %528 = vmatprep.subr.mxu0 %v296
    %529 = vmatpush1.msra.mxu0 %v295
    %530 = vmatprep.subr.mxu0 0.0
    %531 = vmatpush1.msra.mxu0 0.0
    %532 = vmatprep.subr.mxu0 0.0
    %533 = vmatpush1.msra.mxu0 0.0
    %534 = vmatprep.subr.mxu0 0.0
    %535 = vmatpush1.msra.mxu0 0.0
    %536 = vmatprep.subr.mxu0 0.0
    %537 = vmatpush1.msra.mxu0 0.0
    %538 = vmatprep.subr.mxu0 0.0
    %539 = vmatpush1.msra.mxu0 0.0
    %540 = vmatprep.subr.mxu0 0.0
    %541 = vmatpush1.msra.mxu0 0.0
    %542 = vmatprep.subr.mxu0 0.0
    %543 = vmatpush1.msra.mxu0 0.0
    %544 = vmatprep.subr.mxu0 0.0
    %545 = vmatpush1.msra.mxu0 0.0
    %546 = vmatprep.subr.mxu0 0.0
    %547 = vmatpush1.msra.mxu0 0.0
    %548 = vmatprep.subr.mxu0 0.0
    %549 = vmatpush1.msra.mxu0 0.0
    %550 = vmatprep.subr.mxu0 0.0
    %551 = vmatpush1.msra.mxu0 0.0
    %552 = vmatprep.subr.mxu0 0.0
    %553 = vmatpush1.msra.mxu0 0.0
    %554 = vmatprep.subr.mxu0 0.0
    %555 = vmatpush1.msra.mxu0 0.0
    %556 = vmatprep.subr.mxu0 0.0
    %557 = vmatpush1.msra.mxu0 0.0
    %558 = vmatprep.subr.mxu0 0.0
    %559 = vmatpush1.msra.mxu0 0.0
    %560 = vmatprep.subr.mxu0 0.0
    %561 = vmatpush1.msra.mxu0 0.0
    %562 = vmatprep.subr.mxu0 0.0
    %563 = vmatpush1.msra.mxu0 0.0
    %564 = vmatprep.subr.mxu0 0.0
    %565 = vmatpush1.msra.mxu0 0.0
    %566 = vmatprep.subr.mxu0 0.0
    %567 = vmatpush1.msra.mxu0 0.0
    %568 = vmatprep.subr.mxu0 0.0
    %569 = vmatpush1.msra.mxu0 0.0
    %570 = vmatprep.subr.mxu0 0.0
    %571 = vmatpush1.msra.mxu0 0.0
    %572 = vmatprep.subr.mxu0 0.0
    %573 = vmatpush1.msra.mxu0 0.0
    %574 = vmatprep.subr.mxu0 0.0
    %575 = vmatpush1.msra.mxu0 0.0
    %576 = vmatprep.subr.mxu0 0.0
    %577 = vmatpush1.msra.mxu0 0.0
    %578 = vmatprep.subr.mxu0 0.0
    %579 = vmatpush1.msra.mxu0 0.0
    %580 = vmatprep.subr.mxu0 0.0
    %581 = vmatpush1.msra.mxu0 0.0
    %582 = vmatprep.subr.mxu0 0.0
    %583 = vmatpush1.msra.mxu0 0.0
    %584 = vmatprep.subr.mxu0 0.0
    %585 = vmatpush1.msra.mxu0 0.0
    %586 = vmatprep.subr.mxu0 0.0
    %587 = vmatpush1.msra.mxu0 0.0
    %588 = vmatprep.subr.mxu0 0.0
    %589 = vmatpush1.msra.mxu0 0.0
    %590 = vmatprep.subr.mxu0 0.0
    %591 = vmatpush1.msra.mxu0 0.0
    %592 = vmatprep.mubr.f32.mxu0 0.0
    %593 = vmatmul.mubr.f32.gmra.mrb[0].mxu0 %v320
    %v594 = vpop.f32.mrb[0].mxu0
    %v595 = vadd.f32 %v310, %v594
    %v596 = vpop.f32.mrb[0].mxu0
    %v597 = vadd.f32 %v314, %v596
    %598 = vmatprep.mubr.f32.mxu0 0.0
    %599 = vmatmul.mubr.f32.gmra.mrb[0].mxu0 %v323
    %v600 = vpop.f32.mrb[0].mxu0
    %v601 = vadd.f32 %v310, %v600
    %v602 = vpop.f32.mrb[0].mxu0
    %v603 = vadd.f32 %v314, %v602
    %604 = vmatprep.mubr.f32.mxu0 0.0
    %605 = vmatmul.mubr.f32.gmra.mrb[0].mxu0 %v326
    %v606 = vpop.f32.mrb[0].mxu0
    %v607 = vadd.f32 %v310, %v606
    %v608 = vpop.f32.mrb[0].mxu0
    %v609 = vadd.f32 %v314, %v608
    %610 = vmatprep.mubr.f32.mxu0 0.0
    %611 = vmatmul.mubr.f32.gmra.mrb[0].mxu0 %v329
    %v612 = vpop.f32.mrb[0].mxu0
    %v613 = vadd.f32 %v310, %v612
    %v614 = vpop.f32.mrb[0].mxu0
    %v615 = vadd.f32 %v314, %v614
    %616 = vmatprep.mubr.f32.mxu0 0.0
    %617 = vmatmul.mubr.f32.gmra.mrb[0].mxu0 %v332
    %v618 = vpop.f32.mrb[0].mxu0
    %v619 = vadd.f32 %v310, %v618
    %v620 = vpop.f32.mrb[0].mxu0
    %v621 = vadd.f32 %v314, %v620
    %622 = vmatprep.mubr.f32.mxu0 0.0
    %623 = vmatmul.mubr.f32.gmra.mrb[0].mxu0 %v335
    %v624 = vpop.f32.mrb[0].mxu0
    %v625 = vadd.f32 %v310, %v624
    %v626 = vpop.f32.mrb[0].mxu0
    %v627 = vadd.f32 %v314, %v626
    %628 = vmatprep.mubr.f32.mxu0 0.0
    %629 = vmatmul.mubr.f32.gmra.mrb[0].mxu0 %v338
    %v630 = vpop.f32.mrb[0].mxu0
    %v631 = vadd.f32 %v310, %v630
    %v632 = vpop.f32.mrb[0].mxu0
    %v633 = vadd.f32 %v314, %v632
    %634 = vmatprep.mubr.f32.mxu0 0.0
    %635 = vmatmul.mubr.f32.gmra.mrb[0].mxu0 %v341
    %v636 = vpop.f32.mrb[0].mxu0
    %v637 = vadd.f32 %v310, %v636
    %v638 = vpop.f32.mrb[0].mxu0
    %v639 = vadd.f32 %v314, %v638
    %640 = vmatprep.mubr.f32.mxu0 0.0
    %641 = vmatmul.mubr.f32.gmra.mrb[0].mxu0 %v344
    %v642 = vpop.f32.mrb[0].mxu0
    %v643 = vadd.f32 %v310, %v642
    %v644 = vpop.f32.mrb[0].mxu0
    %v645 = vadd.f32 %v314, %v644
    %646 = vmatprep.mubr.f32.mxu0 0.0
    %647 = vmatmul.mubr.f32.gmra.mrb[0].mxu0 %v347
    %v648 = vpop.f32.mrb[0].mxu0
    %v649 = vadd.f32 %v310, %v648
    %v650 = vpop.f32.mrb[0].mxu0
    %v651 = vadd.f32 %v314, %v650
    %652 = vmatprep.mubr.f32.mxu0 0.0
    %653 = vmatmul.mubr.f32.gmra.mrb[0].mxu0 %v350
    %v654 = vpop.f32.mrb[0].mxu0
    %v655 = vadd.f32 %v310, %v654
    %v656 = vpop.f32.mrb[0].mxu0
    %v657 = vadd.f32 %v314, %v656
    %658 = vmatprep.mubr.f32.mxu0 0.0
    %659 = vmatmul.mubr.f32.gmra.mrb[0].mxu0 %v353
    %v660 = vpop.f32.mrb[0].mxu0
    %v661 = vadd.f32 %v310, %v660
    %v662 = vpop.f32.mrb[0].mxu0
    %v663 = vadd.f32 %v314, %v662
    %664 = vmatprep.mubr.f32.mxu0 0.0
    %665 = vmatmul.mubr.f32.gmra.mrb[0].mxu0 %v356
    %v666 = vpop.f32.mrb[0].mxu0
    %v667 = vadd.f32 %v310, %v666
    %v668 = vpop.f32.mrb[0].mxu0
    %v669 = vadd.f32 %v314, %v668
    %670 = vmatprep.mubr.f32.mxu0 0.0
    %671 = vmatmul.mubr.f32.gmra.mrb[0].mxu0 %v359
    %v672 = vpop.f32.mrb[0].mxu0
    %v673 = vadd.f32 %v310, %v672
    %v674 = vpop.f32.mrb[0].mxu0
    %v675 = vadd.f32 %v314, %v674
    %676 = vmatprep.mubr.f32.mxu0 0.0
    %677 = vmatmul.mubr.f32.gmra.mrb[0].mxu0 %v362
    %v678 = vpop.f32.mrb[0].mxu0
    %v679 = vadd.f32 %v310, %v678
    %v680 = vpop.f32.mrb[0].mxu0
    %v681 = vadd.f32 %v314, %v680
    %682 = vmatprep.mubr.f32.mxu0 0.0
    %683 = vmatmul.mubr.f32.gmra.mrb[0].mxu0 %v365
    %v684 = vpop.f32.mrb[0].mxu0
    %v685 = vadd.f32 %v310, %v684
    %v686 = vpop.f32.mrb[0].mxu0
    %v687 = vadd.f32 %v314, %v686
    %688 = vdwg.mxu0
    %689 = vst [vmem:[#allocation2] sm:$0xff] %v434
    %690 = vst [vmem:[#allocation2 + $0x8] sm:$0xff] %v436
    %691 = vst [vmem:[#allocation2 + $0x10] sm:$0xff] %v595
    %692 = vst [vmem:[#allocation2 + $0x18] sm:$0xff] %v597
    %693 = vst [vmem:[#allocation2 + $0x20] sm:$0xff] %v440
    %694 = vst [vmem:[#allocation2 + $0x28] sm:$0xff] %v442
    %695 = vst [vmem:[#allocation2 + $0x30] sm:$0xff] %v601
    %696 = vst [vmem:[#allocation2 + $0x38] sm:$0xff] %v603
    %697 = vst [vmem:[#allocation2 + $0x40] sm:$0xff] %v446
    %698 = vst [vmem:[#allocation2 + $0x48] sm:$0xff] %v448
    %699 = vst [vmem:[#allocation2 + $0x50] sm:$0xff] %v607
    %700 = vst [vmem:[#allocation2 + $0x58] sm:$0xff] %v609
    %701 = vst [vmem:[#allocation2 + $0x60] sm:$0xff] %v452
    %702 = vst [vmem:[#allocation2 + $0x68] sm:$0xff] %v454
    %703 = vst [vmem:[#allocation2 + $0x70] sm:$0xff] %v613
    %704 = vst [vmem:[#allocation2 + $0x78] sm:$0xff] %v615
    %705 = vst [vmem:[#allocation2 + $0x80] sm:$0xff] %v458
    %706 = vst [vmem:[#allocation2 + $0x88] sm:$0xff] %v460
    %707 = vst [vmem:[#allocation2 + $0x90] sm:$0xff] %v619
    %708 = vst [vmem:[#allocation2 + $0x98] sm:$0xff] %v621
    %709 = vst [vmem:[#allocation2 + $0xa0] sm:$0xff] %v464
    %710 = vst [vmem:[#allocation2 + $0xa8] sm:$0xff] %v466
    %711 = vst [vmem:[#allocation2 + $0xb0] sm:$0xff] %v625
    %712 = vst [vmem:[#allocation2 + $0xb8] sm:$0xff] %v627
    %713 = vst [vmem:[#allocation2 + $0xc0] sm:$0xff] %v470
    %714 = vst [vmem:[#allocation2 + $0xc8] sm:$0xff] %v472
    %715 = vst [vmem:[#allocation2 + $0xd0] sm:$0xff] %v631
    %716 = vst [vmem:[#allocation2 + $0xd8] sm:$0xff] %v633
    %717 = vst [vmem:[#allocation2 + $0xe0] sm:$0xff] %v476
    %718 = vst [vmem:[#allocation2 + $0xe8] sm:$0xff] %v478
    %719 = vst [vmem:[#allocation2 + $0xf0] sm:$0xff] %v637
    %720 = vst [vmem:[#allocation2 + $0xf8] sm:$0xff] %v639
    %721 = vst [vmem:[#allocation2 + $0x100] sm:$0xff] %v482
    %722 = vst [vmem:[#allocation2 + $0x108] sm:$0xff] %v484
    %723 = vst [vmem:[#allocation2 + $0x110] sm:$0xff] %v643
    %724 = vst [vmem:[#allocation2 + $0x118] sm:$0xff] %v645
    %725 = vst [vmem:[#allocation2 + $0x120] sm:$0xff] %v488
    %726 = vst [vmem:[#allocation2 + $0x128] sm:$0xff] %v490
    %727 = vst [vmem:[#allocation2 + $0x130] sm:$0xff] %v649
    %728 = vst [vmem:[#allocation2 + $0x138] sm:$0xff] %v651
    %729 = vst [vmem:[#allocation2 + $0x140] sm:$0xff] %v494
    %730 = vst [vmem:[#allocation2 + $0x148] sm:$0xff] %v496
    %731 = vst [vmem:[#allocation2 + $0x150] sm:$0xff] %v655
    %732 = vst [vmem:[#allocation2 + $0x158] sm:$0xff] %v657
    %733 = vst [vmem:[#allocation2 + $0x160] sm:$0xff] %v500
    %734 = vst [vmem:[#allocation2 + $0x168] sm:$0xff] %v502
    %735 = vst [vmem:[#allocation2 + $0x170] sm:$0xff] %v661
    %736 = vst [vmem:[#allocation2 + $0x178] sm:$0xff] %v663
    %737 = vst [vmem:[#allocation2 + $0x180] sm:$0xff] %v506
    %738 = vst [vmem:[#allocation2 + $0x188] sm:$0xff] %v508
    %739 = vst [vmem:[#allocation2 + $0x190] sm:$0xff] %v667
    %740 = vst [vmem:[#allocation2 + $0x198] sm:$0xff] %v669
    %741 = vst [vmem:[#allocation2 + $0x1a0] sm:$0xff] %v512
    %742 = vst [vmem:[#allocation2 + $0x1a8] sm:$0xff] %v514
    %743 = vst [vmem:[#allocation2 + $0x1b0] sm:$0xff] %v673
    %744 = vst [vmem:[#allocation2 + $0x1b8] sm:$0xff] %v675
    %745 = vst [vmem:[#allocation2 + $0x1c0] sm:$0xff] %v518
    %746 = vst [vmem:[#allocation2 + $0x1c8] sm:$0xff] %v520
    %747 = vst [vmem:[#allocation2 + $0x1d0] sm:$0xff] %v679
    %748 = vst [vmem:[#allocation2 + $0x1d8] sm:$0xff] %v681
    %749 = vst [vmem:[#allocation2 + $0x1e0] sm:$0xff] %v524
    %750 = vst [vmem:[#allocation2 + $0x1e8] sm:$0xff] %v526
    %751 = vst [vmem:[#allocation2 + $0x1f0] sm:$0xff] %v685
    %752 = vst [vmem:[#allocation2 + $0x1f8] sm:$0xff] %v687
    // Predicated region
    $region22: #{tpu_custom_call.1} parent=1 // pred_check
      _
    $region23: #{tpu_custom_call.1} parent=1 // pred_check_branch
      %754 = sbr.rel (0) target = $region25
    $region24: #{tpu_custom_call.1} parent=1 // pred_region
      %s756 = ssub.s32 8192, 8192
      %757 = vsyncadd [#allocation3], %s756
      %s758 = sshll.u32 [#allocation2], 4
      %s759 = int_to_ptr.vmem [resolvable:$true] %s758
      %764 = dma.vmem_to_hbm [thread:$0]  %s759, 8192, %s5, [#allocation3], 512, 512, 32
    $region25: #{tpu_custom_call.1} parent=1 // pred_fallthru
      _
    // Predicated region
    $region26: #{tpu_custom_call.1} parent=1 // pred_check
      _
    $region27: #{tpu_custom_call.1} parent=1 // pred_check_branch
      %766 = sbr.rel (0) target = $region29
    $region28: #{tpu_custom_call.1} parent=1 // pred_region
      %767 = dma.done [#allocation3], 8192
    $region29: #{tpu_custom_call.1} parent=1 // pred_fallthru
      _
    %768 = vsyncpa [#allocation3], 1

</llo_original>
